<compile_context>
chip_gen: v5e
topology: v5e:2x2
jax: 0.10.0
libtpu: 0.0.40
codegen_flags: <defaults>
</compile_context>

<pallas_src>
import math

import jax
import jax.numpy as jnp
from jax.experimental import pallas as pl
from jax.experimental.pallas import tpu as pltpu


def _make_rope_kernel(K):
    """out[r, m] = cos( pos[r, m // (2D)] * freq(m) + phase(m) )."""

    def kernel(pos_ref, divsel_ref, phase_ref, out_ref):
        # pos_ref   : (TR, K)     positions, K consecutive points per row
        # divsel_ref: (K, LANE)   frequency rows masked to disjoint lane segments
        # phase_ref : (1, LANE)   [0, -pi/2, 0, -pi/2, ...]  (sin(x)=cos(x-pi/2))
        # out_ref   : (TR, LANE)  fused interleaved cos/sin position code
        ang = phase_ref[...] + pos_ref[:, 0:1] * divsel_ref[0:1, :]
        for k in range(1, K):                      # static unroll; K <= 8
            ang = ang + pos_ref[:, k:k + 1] * divsel_ref[k:k + 1, :]
        out_ref[...] = jnp.cos(ang).astype(out_ref.dtype)

    return kernel


def rotary_position_encoding(x_position, feature_dim, *, tile_rows=8192,
                             out_dtype=jnp.float32):
    """Pallas implementation of RotaryPositionEncoding.forward.

    x_position: [B, N] float positions.
    Returns position_code: [B, N, feature_dim, 2] (out_dtype; float32 default
    matches PyTorch, bfloat16 recommended when the consumer tolerates it).
    """
    B, N = x_position.shape
    D = feature_dim
    assert D % 2 == 0, "feature_dim must be even"
    L2 = 2 * D                      # interleaved code width per point
    total = B * N

    # --- choose K (points folded per output row) -----------------------------
    # Smallest K making the store lane width K*L2 a multiple of 128 (unmasked
    # vst) while dividing B*N (free final reshape); fall back to the largest
    # divisor of B*N with K*L2 <= 128.
    k_dense = math.lcm(L2, 128) // L2
    if k_dense <= 8 and total % k_dense == 0:
        K = k_dense
    else:
        kcap = max(1, min(8, 128 // L2))
        K = max(k for k in range(1, kcap + 1) if total % k == 0)
    lane = K * L2
    rows = total // K

    # --- choose row tile ------------------------------------------------------
    itemsize = jnp.dtype(out_dtype).itemsize
    # Double-buffered VMEM bytes per tile row: output block + f32 position block
    # (a (tr, K) f32 block lane-pads to 128 lanes in VMEM).
    bytes_per_row = 2 * (lane * itemsize + 128 * 4)
    tr = max(16, (int(tile_rows) // 16) * 16)       # bf16-safe sublane multiple
    while tr > 16 and tr * bytes_per_row > (16 << 20):
        tr //= 2
    tr = max(16, (tr // 16) * 16)
    if rows <= tr:
        if rows >= 128:
            # Keep >= 2 grid steps so both v7x TensorCores get work.
            tr = ((pl.cdiv(rows, 2) + 15) // 16) * 16
        else:
            tr = rows          # tiny input: single block == full array dims
    grid0 = pl.cdiv(rows, tr)

    # --- inputs ---------------------------------------------------------------
    # Positions padded (input side only, cheap) so every position block is
    # in-bounds; the partial last *output* block, if any, is clipped by Pallas.
    rows_pad = grid0 * tr
    pos_flat = x_position.astype(jnp.float32).reshape(total)
    if rows_pad * K != total:
        pos_flat = jnp.pad(pos_flat, (0, rows_pad * K - total))
    pos2 = pos_flat.reshape(rows_pad, K)

    # Frequency / phase tables (tiny, built once in the wrapper):
    #   div_quad[q] = f_{q//4}  (each frequency repeated 4x: [cos,sin] x 2 dup)
    #   divsel[k]   = div_quad tiled K times, masked to lane segment k
    #   phase[q]    = 0 for even q (cos), -pi/2 for odd q (sin = cos(x - pi/2))
    half = jnp.arange(0, D, 2, dtype=jnp.float32)
    div_term = jnp.exp(half * (-math.log(10000.0) / D))          # (D/2,)
    div_quad = jnp.repeat(div_term, 4)                           # (L2,)
    div_tiled = jnp.tile(div_quad, K)                            # (lane,)
    seg = jnp.arange(lane, dtype=jnp.int32) // L2
    seg_mask = seg[None, :] == jnp.arange(K, dtype=jnp.int32)[:, None]
    divsel = jnp.where(seg_mask, div_tiled[None, :], 0.0)        # (K, lane) f32
    phase = jnp.tile(jnp.array([0.0, -0.5 * math.pi], dtype=jnp.float32),
                     lane // 2).reshape(1, lane)

    out2d = pl.pallas_call(
        _make_rope_kernel(K),
        out_shape=jax.ShapeDtypeStruct((rows, lane), out_dtype),
        grid_spec=pltpu.PrefetchScalarGridSpec(
            num_scalar_prefetch=0,
            grid=(grid0,),
            in_specs=[
                pl.BlockSpec((tr, K), lambda r: (r, 0)),      # positions
                pl.BlockSpec((K, lane), lambda r: (0, 0)),    # masked freqs
                pl.BlockSpec((1, lane), lambda r: (0, 0)),    # phases
            ],
            out_specs=pl.BlockSpec((tr, lane), lambda r: (r, 0)),
        ),
        compiler_params=pltpu.CompilerParams(
            dimension_semantics=("parallel",),
            vmem_limit_bytes=32 * 1024 * 1024),
    )(pos2, divsel, phase)

    # (rows, K*2D) -> (B, N, D, 2): contiguity-preserving (free; K divides B*N).
    return out2d.reshape(B, N, D, 2)


def _reference(x_position, feature_dim):
    """Pure-JAX mirror of the PyTorch forward."""
    B, N = x_position.shape
    D = feature_dim
    div_term = jnp.exp(
        jnp.arange(0, D, 2, dtype=jnp.float32) * (-math.log(10000.0) / D)
    ).reshape(1, 1, -1)
    x = x_position.astype(jnp.float32)[..., None]                 # (B, N, 1)
    sinx = jnp.sin(x * div_term)                                  # (B, N, D/2)
    cosx = jnp.cos(x * div_term)
    sin_pos = jnp.stack([sinx, sinx], axis=-1).reshape(B, N, -1)
    cos_pos = jnp.stack([cosx, cosx], axis=-1).reshape(B, N, -1)
    return jnp.stack([cos_pos, sin_pos], axis=-1)                 # (B, N, D, 2)


if __name__ == "__main__":
    key = jax.random.PRNGKey(0)

    # Primary example: feature_dim=32 -> 2D=64, K=2 -> 128-lane dense rows.
    B, N, D = 2, 64, 32
    x_position = jax.random.uniform(key, (B, N), dtype=jnp.float32) * 10.0
    out = jax.block_until_ready(rotary_position_encoding(x_position, D))
    ref = _reference(x_position, D)
    assert out.shape == (B, N, D, 2), out.shape
    assert out.dtype == jnp.float32
    assert jnp.allclose(out, ref, atol=1e-5, rtol=1e-5)

    # Unfolded path (K=1): feature_dim=128 -> 256-lane rows directly.
    x2 = jax.random.uniform(jax.random.PRNGKey(1), (2, 16), dtype=jnp.float32) * 10.0
    out2 = jax.block_until_ready(rotary_position_encoding(x2, 128))
    assert jnp.allclose(out2, _reference(x2, 128), atol=1e-5, rtol=1e-5)

    # Ragged point count (total=66): K=2 divides it, single full-array block,
    # no padding or extra output copy.
    x3 = jax.random.uniform(jax.random.PRNGKey(2), (2, 33), dtype=jnp.float32) * 10.0
    out3 = jax.block_until_ready(rotary_position_encoding(x3, 32))
    assert jnp.allclose(out3, _reference(x3, 32), atol=1e-5, rtol=1e-5)

    # Multi-step grid with a partial (clipped) last output block: rows=400.
    x4 = jax.random.uniform(jax.random.PRNGKey(3), (2, 400), dtype=jnp.float32) * 10.0
    out4 = jax.block_until_ready(rotary_position_encoding(x4, 32))
    assert jnp.allclose(out4, _reference(x4, 32), atol=1e-5, rtol=1e-5)

    # bf16 output path (halves HBM writeback traffic on the write-bound chips).
    out5 = jax.block_until_ready(
        rotary_position_encoding(x_position, D, out_dtype=jnp.bfloat16))
    assert out5.dtype == jnp.bfloat16
    assert jnp.allclose(out5.astype(jnp.float32), ref, atol=1e-2, rtol=1e-2)

    print("KERNEL_OK")
</pallas_src>

<mosaic_0001>
module attributes {stable_mosaic.version = 11 : i64} {
  func.func @kernel(%arg0: i32, %arg1: memref<64x2xf32, #tpu.memory_space<vmem>>, %arg2: memref<2x128xf32, #tpu.memory_space<vmem>>, %arg3: memref<1x128xf32, #tpu.memory_space<vmem>>, %arg4: memref<64x128xf32, #tpu.memory_space<vmem>>) attributes {dimension_semantics = [#tpu.dimension_semantics<parallel>], iteration_bounds = array<i64: 1>, scalar_prefetch = 0 : i64, scratch_operands = 0 : i64, tpu.core_type = #tpu.core_type<tc>, window_params = [{transform_indices = @transform_0, window_bounds = array<i64: 64, 2>}, {pipeline_mode = #tpu.pipeline_mode<synchronous>, transform_indices = @transform_1, window_bounds = array<i64: 2, 128>}, {pipeline_mode = #tpu.pipeline_mode<synchronous>, transform_indices = @transform_2, window_bounds = array<i64: 1, 128>}, {transform_indices = @transform_3, window_bounds = array<i64: 64, 128>}]} {
    %c0 = arith.constant 0 : index
    %c0_0 = arith.constant 0 : index
    %0 = vector.load %arg3[%c0, %c0_0] : memref<1x128xf32, #tpu.memory_space<vmem>>, vector<1x128xf32>
    %c0_1 = arith.constant 0 : index
    %c0_2 = arith.constant 0 : index
    %1 = vector.load %arg1[%c0_1, %c0_2] : memref<64x2xf32, #tpu.memory_space<vmem>>, vector<64x1xf32>
    %c0_3 = arith.constant 0 : index
    %c0_4 = arith.constant 0 : index
    %2 = vector.load %arg2[%c0_3, %c0_4] : memref<2x128xf32, #tpu.memory_space<vmem>>, vector<1x128xf32>
    %3 = vector.broadcast %1 : vector<64x1xf32> to vector<64x128xf32>
    %4 = vector.broadcast %2 : vector<1x128xf32> to vector<64x128xf32>
    %5 = arith.mulf %3, %4 : vector<64x128xf32>
    %6 = vector.broadcast %0 : vector<1x128xf32> to vector<64x128xf32>
    %7 = arith.addf %6, %5 : vector<64x128xf32>
    %c0_5 = arith.constant 0 : index
    %c1 = arith.constant 1 : index
    %8 = vector.load %arg1[%c0_5, %c1] : memref<64x2xf32, #tpu.memory_space<vmem>>, vector<64x1xf32>
    %c1_6 = arith.constant 1 : index
    %c0_7 = arith.constant 0 : index
    %9 = vector.load %arg2[%c1_6, %c0_7] : memref<2x128xf32, #tpu.memory_space<vmem>>, vector<1x128xf32>
    %10 = vector.broadcast %8 : vector<64x1xf32> to vector<64x128xf32>
    %11 = vector.broadcast %9 : vector<1x128xf32> to vector<64x128xf32>
    %12 = arith.mulf %10, %11 : vector<64x128xf32>
    %13 = arith.addf %7, %12 : vector<64x128xf32>
    %14 = math.cos %13 : vector<64x128xf32>
    %c0_8 = arith.constant 0 : index
    %c0_9 = arith.constant 0 : index
    %15 = vector.load %arg4[%c0_8, %c0_9] : memref<64x128xf32, #tpu.memory_space<vmem>>, vector<64x128xf32>
    tpu.vector_store %arg4[%c0_8, %c0_9], %14 {strides = array<i32>} : memref<64x128xf32, #tpu.memory_space<vmem>>, vector<64x128xf32>,
    return
  }
  func.func @transform_0(%arg0: i32) -> (i32, i32) {
    %c0_i32 = arith.constant 0 : i32
    %c0_i32_0 = arith.constant 0 : i32
    return %arg0, %c0_i32 : i32, i32
  }
  func.func @transform_1(%arg0: i32) -> (i32, i32) {
    %c0_i32 = arith.constant 0 : i32
    %c0_i32_0 = arith.constant 0 : i32
    %c0_i32_1 = arith.constant 0 : i32
    return %c0_i32, %c0_i32_0 : i32, i32
  }
  func.func @transform_2(%arg0: i32) -> (i32, i32) {
    %c0_i32 = arith.constant 0 : i32
    %c0_i32_0 = arith.constant 0 : i32
    %c0_i32_1 = arith.constant 0 : i32
    return %c0_i32, %c0_i32_0 : i32, i32
  }
  func.func @transform_3(%arg0: i32) -> (i32, i32) {
    %c0_i32 = arith.constant 0 : i32
    %c0_i32_0 = arith.constant 0 : i32
    return %arg0, %c0_i32 : i32, i32
  }
}

</mosaic_0001>

<llo_original>
// kernel: tpu_custom_call.1
$region0: #{tpu_custom_call.1}
  #allocation0 [shape = 'u32[]', space=smem, size = 0x4, offset = 0x4, fixed_abs, tag = 'smem constant byte address 0x4 - core index']
  #allocation1 [shape = 'u32[72,128]{1,0:T(1,128)}', space=vmem, size = 0x9000, scoped, tag = 'internal scratch']
  %s0 = inlined_call_operand.vmem [shape: f32[64,2], index: 0, kind: input, shape index: {}]
  %s1 = inlined_call_operand.vmem [shape: f32[2,128], index: 1, kind: input, shape index: {}]
  %s2 = inlined_call_operand.vmem [shape: f32[1,128], index: 2, kind: input, shape index: {}]
  %s3 = inlined_call_operand.hbm [shape: f32[64,128], index: 3, kind: output, shape index: {}]
  %s4 = sld [smem:[#allocation0]]
  $region22: #{tpu_custom_call.1} parent=0
    _
  %s6 = ssub.s32 1, %s4
  %s7 = scalar_select 0, %s6, %s4
  $region1: #{tpu_custom_call.1} parent=0
    #allocation2 [shape = 'u8[32768]{0}', space=vmem, size = 0x8000, scoped, tag = 'output window, operand 0, single buffered']
    #allocation3 [shape = 's32[1]{0}', space=sflag, size = 0x4, scoped, tag = 'scoped memory for tpu_custom_call.1']
    %8 = vsyncpa [#allocation3], 0
    // Predicated region
    $region2: #{tpu_custom_call.1} parent=1 // pred_check
      _
    $region3: #{tpu_custom_call.1} parent=1 // pred_check_branch
      %10 = sbr.rel (0) target = $region5
    $region4: #{tpu_custom_call.1} parent=1 // pred_region
      _
    $region5: #{tpu_custom_call.1} parent=1 // pred_fallthru
      _
    // Predicated region
    $region6: #{tpu_custom_call.1} parent=1 // pred_check
      _
    $region7: #{tpu_custom_call.1} parent=1 // pred_check_branch
      %12 = sbr.rel (0) target = $region9
    $region8: #{tpu_custom_call.1} parent=1 // pred_region
      _
    $region9: #{tpu_custom_call.1} parent=1 // pred_fallthru
      _
    // Predicated region
    $region10: #{tpu_custom_call.1} parent=1 // pred_check
      _
    $region11: #{tpu_custom_call.1} parent=1 // pred_check_branch
      %14 = sbr.rel (0) target = $region13
    $region12: #{tpu_custom_call.1} parent=1 // pred_region
      _
    $region13: #{tpu_custom_call.1} parent=1 // pred_fallthru
      _
    %v15 = vld [vmem:[%s2] sm:$0x1]
    %v16 = vld [vmem:[%s0] sm:$0xff]
    %v17 = vld [vmem:[%s0 + $0x8] sm:$0xff]
    %v18 = vld [vmem:[%s0 + $0x10] sm:$0xff]
    %v19 = vld [vmem:[%s0 + $0x18] sm:$0xff]
    %v20 = vld [vmem:[%s0 + $0x20] sm:$0xff]
    %v21 = vld [vmem:[%s0 + $0x28] sm:$0xff]
    %v22 = vld [vmem:[%s0 + $0x30] sm:$0xff]
    %v23 = vld [vmem:[%s0 + $0x38] sm:$0xff]
    %v24 = vld [vmem:[%s1] sm:$0x1]
    %26 = vset.pattern.permute.xlu0 0
    %27 = vperm.xlu0 %26, %v16
    %v28 = vpop.permute.xlu0 %27
    %31 = vset.pattern.permute.xlu0 0
    %32 = vperm.xlu0 %31, %v17
    %v33 = vpop.permute.xlu0 %32
    %36 = vset.pattern.permute.xlu0 0
    %37 = vperm.xlu0 %36, %v18
    %v38 = vpop.permute.xlu0 %37
    %41 = vset.pattern.permute.xlu0 0
    %42 = vperm.xlu0 %41, %v19
    %v43 = vpop.permute.xlu0 %42
    %46 = vset.pattern.permute.xlu0 0
    %47 = vperm.xlu0 %46, %v20
    %v48 = vpop.permute.xlu0 %47
    %51 = vset.pattern.permute.xlu0 0
    %52 = vperm.xlu0 %51, %v21
    %v53 = vpop.permute.xlu0 %52
    %56 = vset.pattern.permute.xlu0 0
    %57 = vperm.xlu0 %56, %v22
    %v58 = vpop.permute.xlu0 %57
    %61 = vset.pattern.permute.xlu0 0
    %62 = vperm.xlu0 %61, %v23
    %v63 = vpop.permute.xlu0 %62
    %v65 = vperm.slane %v24, 0
    %v66 = vmul.f32 %v28, %v65
    %v67 = vmul.f32 %v33, %v65
    %v68 = vmul.f32 %v38, %v65
    %v69 = vmul.f32 %v43, %v65
    %v70 = vmul.f32 %v48, %v65
    %v71 = vmul.f32 %v53, %v65
    %v72 = vmul.f32 %v58, %v65
    %v73 = vmul.f32 %v63, %v65
    %v75 = vperm.slane %v15, 0
    %v77 = vadd.f32 %v75, %v66
    %v78 = vadd.f32 %v75, %v67
    %v79 = vadd.f32 %v75, %v68
    %v80 = vadd.f32 %v75, %v69
    %v81 = vadd.f32 %v75, %v70
    %v82 = vadd.f32 %v75, %v71
    %v83 = vadd.f32 %v75, %v72
    %v84 = vadd.f32 %v75, %v73
    %v85 = vld [vmem:[%s1 + $0x1] sm:$0x1]
    %86 = vset.pattern.permute.xlu0 1
    %87 = vperm.xlu0 %86, %v16
    %v88 = vpop.permute.xlu0 %87
    %90 = vset.pattern.permute.xlu0 1
    %91 = vperm.xlu0 %90, %v17
    %v92 = vpop.permute.xlu0 %91
    %94 = vset.pattern.permute.xlu0 1
    %95 = vperm.xlu0 %94, %v18
    %v96 = vpop.permute.xlu0 %95
    %98 = vset.pattern.permute.xlu0 1
    %99 = vperm.xlu0 %98, %v19
    %v100 = vpop.permute.xlu0 %99
    %102 = vset.pattern.permute.xlu0 1
    %103 = vperm.xlu0 %102, %v20
    %v104 = vpop.permute.xlu0 %103
    %106 = vset.pattern.permute.xlu0 1
    %107 = vperm.xlu0 %106, %v21
    %v108 = vpop.permute.xlu0 %107
    %110 = vset.pattern.permute.xlu0 1
    %111 = vperm.xlu0 %110, %v22
    %v112 = vpop.permute.xlu0 %111
    %114 = vset.pattern.permute.xlu0 1
    %115 = vperm.xlu0 %114, %v23
    %v116 = vpop.permute.xlu0 %115
    %v118 = vperm.slane %v85, 0
    %v119 = vmul.f32 %v88, %v118
    %v120 = vmul.f32 %v92, %v118
    %v121 = vmul.f32 %v96, %v118
    %v122 = vmul.f32 %v100, %v118
    %v123 = vmul.f32 %v104, %v118
    %v124 = vmul.f32 %v108, %v118
    %v125 = vmul.f32 %v112, %v118
    %v126 = vmul.f32 %v116, %v118
    %v127 = vadd.f32 %v77, %v119
    %v128 = vadd.f32 %v78, %v120
    %v129 = vadd.f32 %v79, %v121
    %v130 = vadd.f32 %v80, %v122
    %v131 = vadd.f32 %v81, %v123
    %v132 = vadd.f32 %v82, %v124
    %v133 = vadd.f32 %v83, %v125
    %v134 = vadd.f32 %v84, %v126
    %v135 = vand.u32 2147483647, %v127
    %vm136 = vcmp.le.f32.partialorder %v135, 0.7853982
    %vm137 = vcmp.lt.s32.totalorder %v127, 0
    %v138 = vand.u32 %v127, 2139095040
    %v139 = vshrl.u32 %v138, 23
    %v140 = vsub.s32 %v139, 127
    %v141 = vand.u32 2147483647, %v127
    %v142 = vand.u32 %v141, 8388607
    %v143 = vor.u32 %v142, 8388608
    %v144 = vsub.s32 0, %v143
    %v145 = vadd.s32 %v140, 1
    %vm146 = vcmp.gt.s32.totalorder %v145, 0
    %v147 = vsel %vm146, %v145, 0
    %v148 = vshrl.u32 %v147, 5
    %v149 = vand.u32 %v147, 31
    %v150 = vsub.s32 32, %v149
    %v151 = vshrl.u32 683565275, %v150
    %v152 = vshll.u32 683565275, %v149
    %v153 = vshrl.u32 2475754826, %v150
    %v154 = vor.u32 %v152, %v153
    %v155 = vshll.u32 2475754826, %v149
    %v156 = vshrl.u32 2131351028, %v150
    %v157 = vor.u32 %v155, %v156
    %v158 = vshll.u32 2131351028, %v149
    %v159 = vshrl.u32 2102212464, %v150
    %v160 = vor.u32 %v158, %v159
    %v161 = vshll.u32 2102212464, %v149
    %v162 = vshrl.u32 920167782, %v150
    %v163 = vor.u32 %v161, %v162
    %v164 = vshll.u32 920167782, %v149
    %v165 = vshrl.u32 1326507024, %v150
    %v166 = vor.u32 %v164, %v165
    %vm167 = vcmp.lt.s32.totalorder %v148, 1
    %vm168 = vcmp.lt.s32.totalorder %v148, 2
    %vm169 = vcmp.lt.s32.totalorder %v148, 3
    %vm170 = vcmp.lt.s32.totalorder %v148, 4
    %v171 = vsel %vm167, %v151, %v154
    %v172 = vsel %vm170, %v160, 2102212464
    %v173 = vsel %vm169, %v157, %v172
    %v174 = vsel %vm168, %v171, %v173
    %v175 = vsel %vm167, %v154, %v157
    %v176 = vsel %vm170, %v163, 920167782
    %v177 = vsel %vm169, %v160, %v176
    %v178 = vsel %vm168, %v175, %v177
    %v179 = vsel %vm167, %v157, %v160
    %v180 = vsel %vm170, %v166, 1326507024
    %v181 = vsel %vm169, %v163, %v180
    %v182 = vsel %vm168, %v179, %v181
    %v183 = vshll.u32 %v143, 8
    %v184 = vand.u32 %v183, 65535
    %v185 = vshrl.u32 %v183, 16
    %v186 = vand.u32 %v182, 65535
    %v187 = vshrl.u32 %v182, 16
    %v188 = vmul.u32 %v184, %v186
    %v189 = vmul.u32 %v184, %v187
    %v190 = vmul.u32 %v185, %v186
    %v191 = vmul.u32 %v185, %v187
    %v192 = vshll.u32 %v189, 16
    %v193 = vshrl.u32 %v189, 16
    %v194 = vshll.u32 %v190, 16
    %v195 = vshrl.u32 %v190, 16
    %vm196 = vc.u32 %v188, %v192
    %v197 = vsel %vm196, 1, 0
    %v198 = vadd.s32 %v188, %v192
    %v199 = vadd.s32 %v191, %v197
    %vm200 = vc.u32 %v198, %v194
    %v201 = vsel %vm200, 1, 0
    %v202 = vadd.s32 %v198, %v194
    %v203 = vadd.s32 %v199, %v201
    %v204 = vadd.s32 %v203, %v193
    %v205 = vadd.s32 %v204, %v195
    %v206 = vand.u32 %v183, 65535
    %v207 = vshrl.u32 %v183, 16
    %v208 = vand.u32 %v178, 65535
    %v209 = vshrl.u32 %v178, 16
    %v210 = vmul.u32 %v206, %v208
    %v211 = vmul.u32 %v206, %v209
    %v212 = vmul.u32 %v207, %v208
    %v213 = vmul.u32 %v207, %v209
    %v214 = vshll.u32 %v211, 16
    %v215 = vshrl.u32 %v211, 16
    %v216 = vshll.u32 %v212, 16
    %v217 = vshrl.u32 %v212, 16
    %vm218 = vc.u32 %v210, %v214
    %v219 = vsel %vm218, 1, 0
    %v220 = vadd.s32 %v210, %v214
    %v221 = vadd.s32 %v213, %v219
    %vm222 = vc.u32 %v220, %v216
    %v223 = vsel %vm222, 1, 0
    %v224 = vadd.s32 %v220, %v216
    %v225 = vadd.s32 %v221, %v223
    %v226 = vadd.s32 %v225, %v215
    %v227 = vadd.s32 %v226, %v217
    %v228 = vmul.u32 %v183, %v174
    %v229 = vadd.s32 %v205, %v224
    %vm230 = vc.u32 %v205, %v224
    %v231 = vadd.s32 %v227, 1
    %v232 = vsel %vm230, %v231, %v227
    %v233 = vadd.s32 %v228, %v232
    %v234 = vadd.s32 %v233, 536870912
    %v235 = vshrl.u32 %v234, 30
    %v236 = vshll.u32 %v235, 30
    %v237 = vsub.s32 %v233, %v236
    %vm238 = vcmp.lt.s32.totalorder %v237, 0
    %v239 = vsub.s32 0, %v237
    %v240 = vsel %vm238, %v239, %v237
    %v241 = vclz %v240
    %v242 = vsub.s32 %v241, 2
    %vm243 = vcmp.gt.s32.totalorder 0, %v242
    %v244 = vsel %vm243, 0, %v242
    %v245 = vsub.s32 32, %v244
    %v246 = vshll.u32 %v237, %v244
    %v247 = vshrl.u32 %v229, %v245
    %v248 = vor.u32 %v246, %v247
    %v249 = vsub.s32 4294967266, %v244
    %v250 = vadd.s32 %v249, 127
    %v251 = vshll.u32 %v250, 23
    %v252 = vor.u32 4788187, %v251
    %v253 = vand.u32 2147483647, %v252
    %v255 = vcvt.s32.f32 %v248
    %v256 = vmul.f32 %v255, %v253
    %v257 = vxor.u32 %v256, 2147483648
    %v258 = vsel %vm137, %v257, %v256
    %v259 = vsub.s32 4, %v235
    %v260 = vsel %vm137, %v259, %v235
    %v261 = vsel %vm136, %v127, %v258
    %v262 = vsel %vm136, 0, %v260
    %v263 = vmul.f32 %v261, %v261
    %v264 = vmul.f32 %v263, -0.001358992
    %v265 = vadd.f32 %v264, 0.041655596
    %v266 = vmul.f32 %v263, %v265
    %v267 = vadd.f32 %v266, -0.4999988
    %v268 = vmul.f32 %v263, %v267
    %v269 = vadd.f32 1.0, %v268
    %v270 = vmul.f32 %v261, %v261
    %v271 = vmul.f32 %v270, -0.00019511016
    %v272 = vadd.f32 %v271, 0.008332121
    %v273 = vmul.f32 %v270, %v272
    %v274 = vadd.f32 %v273, -0.16666654
    %v275 = vmul.f32 %v270, %v274
    %v276 = vadd.f32 %v275, 1.0
    %v277 = vmul.f32 %v276, %v261
    %vm278 = vweird.f32 %v127
    %v279 = vand.u32 %v262, 3
    %vm280 = vcmp.lt.s32.totalorder %v279, 2
    %vm281 = vcmp.eq.s32.totalorder %v279, 0
    %v282 = vxor.u32 %v277, 2147483648
    %v283 = vsel %vm281, %v269, %v282
    %vm284 = vcmp.eq.s32.totalorder %v279, 2
    %v285 = vxor.u32 %v269, 2147483648
    %v286 = vsel %vm284, %v285, %v277
    %v287 = vsel %vm280, %v283, %v286
    %v288 = vsel %vm278, nan, %v287
    %v289 = vand.u32 2147483647, %v128
    %vm290 = vcmp.le.f32.partialorder %v289, 0.7853982
    %vm291 = vcmp.lt.s32.totalorder %v128, 0
    %v292 = vand.u32 %v128, 2139095040
    %v293 = vshrl.u32 %v292, 23
    %v294 = vsub.s32 %v293, 127
    %v295 = vand.u32 2147483647, %v128
    %v296 = vand.u32 %v295, 8388607
    %v297 = vor.u32 %v296, 8388608
    %v298 = vsub.s32 0, %v297
    %v299 = vadd.s32 %v294, 1
    %vm300 = vcmp.gt.s32.totalorder %v299, 0
    %v301 = vsel %vm300, %v299, 0
    %v302 = vshrl.u32 %v301, 5
    %v303 = vand.u32 %v301, 31
    %v304 = vsub.s32 32, %v303
    %v305 = vshrl.u32 683565275, %v304
    %v306 = vshll.u32 683565275, %v303
    %v307 = vshrl.u32 2475754826, %v304
    %v308 = vor.u32 %v306, %v307
    %v309 = vshll.u32 2475754826, %v303
    %v310 = vshrl.u32 2131351028, %v304
    %v311 = vor.u32 %v309, %v310
    %v312 = vshll.u32 2131351028, %v303
    %v313 = vshrl.u32 2102212464, %v304
    %v314 = vor.u32 %v312, %v313
    %v315 = vshll.u32 2102212464, %v303
    %v316 = vshrl.u32 920167782, %v304
    %v317 = vor.u32 %v315, %v316
    %v318 = vshll.u32 920167782, %v303
    %v319 = vshrl.u32 1326507024, %v304
    %v320 = vor.u32 %v318, %v319
    %vm321 = vcmp.lt.s32.totalorder %v302, 1
    %vm322 = vcmp.lt.s32.totalorder %v302, 2
    %vm323 = vcmp.lt.s32.totalorder %v302, 3
    %vm324 = vcmp.lt.s32.totalorder %v302, 4
    %v325 = vsel %vm321, %v305, %v308
    %v326 = vsel %vm324, %v314, 2102212464
    %v327 = vsel %vm323, %v311, %v326
    %v328 = vsel %vm322, %v325, %v327
    %v329 = vsel %vm321, %v308, %v311
    %v330 = vsel %vm324, %v317, 920167782
    %v331 = vsel %vm323, %v314, %v330
    %v332 = vsel %vm322, %v329, %v331
    %v333 = vsel %vm321, %v311, %v314
    %v334 = vsel %vm324, %v320, 1326507024
    %v335 = vsel %vm323, %v317, %v334
    %v336 = vsel %vm322, %v333, %v335
    %v337 = vshll.u32 %v297, 8
    %v338 = vand.u32 %v337, 65535
    %v339 = vshrl.u32 %v337, 16
    %v340 = vand.u32 %v336, 65535
    %v341 = vshrl.u32 %v336, 16
    %v342 = vmul.u32 %v338, %v340
    %v343 = vmul.u32 %v338, %v341
    %v344 = vmul.u32 %v339, %v340
    %v345 = vmul.u32 %v339, %v341
    %v346 = vshll.u32 %v343, 16
    %v347 = vshrl.u32 %v343, 16
    %v348 = vshll.u32 %v344, 16
    %v349 = vshrl.u32 %v344, 16
    %vm350 = vc.u32 %v342, %v346
    %v351 = vsel %vm350, 1, 0
    %v352 = vadd.s32 %v342, %v346
    %v353 = vadd.s32 %v345, %v351
    %vm354 = vc.u32 %v352, %v348
    %v355 = vsel %vm354, 1, 0
    %v356 = vadd.s32 %v352, %v348
    %v357 = vadd.s32 %v353, %v355
    %v358 = vadd.s32 %v357, %v347
    %v359 = vadd.s32 %v358, %v349
    %v360 = vand.u32 %v337, 65535
    %v361 = vshrl.u32 %v337, 16
    %v362 = vand.u32 %v332, 65535
    %v363 = vshrl.u32 %v332, 16
    %v364 = vmul.u32 %v360, %v362
    %v365 = vmul.u32 %v360, %v363
    %v366 = vmul.u32 %v361, %v362
    %v367 = vmul.u32 %v361, %v363
    %v368 = vshll.u32 %v365, 16
    %v369 = vshrl.u32 %v365, 16
    %v370 = vshll.u32 %v366, 16
    %v371 = vshrl.u32 %v366, 16
    %vm372 = vc.u32 %v364, %v368
    %v373 = vsel %vm372, 1, 0
    %v374 = vadd.s32 %v364, %v368
    %v375 = vadd.s32 %v367, %v373
    %vm376 = vc.u32 %v374, %v370
    %v377 = vsel %vm376, 1, 0
    %v378 = vadd.s32 %v374, %v370
    %v379 = vadd.s32 %v375, %v377
    %v380 = vadd.s32 %v379, %v369
    %v381 = vadd.s32 %v380, %v371
    %v382 = vmul.u32 %v337, %v328
    %v383 = vadd.s32 %v359, %v378
    %vm384 = vc.u32 %v359, %v378
    %v385 = vadd.s32 %v381, 1
    %v386 = vsel %vm384, %v385, %v381
    %v387 = vadd.s32 %v382, %v386
    %v388 = vadd.s32 %v387, 536870912
    %v389 = vshrl.u32 %v388, 30
    %v390 = vshll.u32 %v389, 30
    %v391 = vsub.s32 %v387, %v390
    %vm392 = vcmp.lt.s32.totalorder %v391, 0
    %v393 = vsub.s32 0, %v391
    %v394 = vsel %vm392, %v393, %v391
    %v395 = vclz %v394
    %v396 = vsub.s32 %v395, 2
    %vm397 = vcmp.gt.s32.totalorder 0, %v396
    %v398 = vsel %vm397, 0, %v396
    %v399 = vsub.s32 32, %v398
    %v400 = vshll.u32 %v391, %v398
    %v401 = vshrl.u32 %v383, %v399
    %v402 = vor.u32 %v400, %v401
    %v403 = vsub.s32 4294967266, %v398
    %v404 = vadd.s32 %v403, 127
    %v405 = vshll.u32 %v404, 23
    %v406 = vor.u32 4788187, %v405
    %v407 = vand.u32 2147483647, %v406
    %v409 = vcvt.s32.f32 %v402
    %v410 = vmul.f32 %v409, %v407
    %v411 = vxor.u32 %v410, 2147483648
    %v412 = vsel %vm291, %v411, %v410
    %v413 = vsub.s32 4, %v389
    %v414 = vsel %vm291, %v413, %v389
    %v415 = vsel %vm290, %v128, %v412
    %v416 = vsel %vm290, 0, %v414
    %v417 = vmul.f32 %v415, %v415
    %v418 = vmul.f32 %v417, -0.001358992
    %v419 = vadd.f32 %v418, 0.041655596
    %v420 = vmul.f32 %v417, %v419
    %v421 = vadd.f32 %v420, -0.4999988
    %v422 = vmul.f32 %v417, %v421
    %v423 = vadd.f32 1.0, %v422
    %v424 = vmul.f32 %v415, %v415
    %v425 = vmul.f32 %v424, -0.00019511016
    %v426 = vadd.f32 %v425, 0.008332121
    %v427 = vmul.f32 %v424, %v426
    %v428 = vadd.f32 %v427, -0.16666654
    %v429 = vmul.f32 %v424, %v428
    %v430 = vadd.f32 %v429, 1.0
    %v431 = vmul.f32 %v430, %v415
    %vm432 = vweird.f32 %v128
    %v433 = vand.u32 %v416, 3
    %vm434 = vcmp.lt.s32.totalorder %v433, 2
    %vm435 = vcmp.eq.s32.totalorder %v433, 0
    %v436 = vxor.u32 %v431, 2147483648
    %v437 = vsel %vm435, %v423, %v436
    %vm438 = vcmp.eq.s32.totalorder %v433, 2
    %v439 = vxor.u32 %v423, 2147483648
    %v440 = vsel %vm438, %v439, %v431
    %v441 = vsel %vm434, %v437, %v440
    %v442 = vsel %vm432, nan, %v441
    %v443 = vand.u32 2147483647, %v129
    %vm444 = vcmp.le.f32.partialorder %v443, 0.7853982
    %vm445 = vcmp.lt.s32.totalorder %v129, 0
    %v446 = vand.u32 %v129, 2139095040
    %v447 = vshrl.u32 %v446, 23
    %v448 = vsub.s32 %v447, 127
    %v449 = vand.u32 2147483647, %v129
    %v450 = vand.u32 %v449, 8388607
    %v451 = vor.u32 %v450, 8388608
    %v452 = vsub.s32 0, %v451
    %v453 = vadd.s32 %v448, 1
    %vm454 = vcmp.gt.s32.totalorder %v453, 0
    %v455 = vsel %vm454, %v453, 0
    %v456 = vshrl.u32 %v455, 5
    %v457 = vand.u32 %v455, 31
    %v458 = vsub.s32 32, %v457
    %v459 = vshrl.u32 683565275, %v458
    %v460 = vshll.u32 683565275, %v457
    %v461 = vshrl.u32 2475754826, %v458
    %v462 = vor.u32 %v460, %v461
    %v463 = vshll.u32 2475754826, %v457
    %v464 = vshrl.u32 2131351028, %v458
    %v465 = vor.u32 %v463, %v464
    %v466 = vshll.u32 2131351028, %v457
    %v467 = vshrl.u32 2102212464, %v458
    %v468 = vor.u32 %v466, %v467
    %v469 = vshll.u32 2102212464, %v457
    %v470 = vshrl.u32 920167782, %v458
    %v471 = vor.u32 %v469, %v470
    %v472 = vshll.u32 920167782, %v457
    %v473 = vshrl.u32 1326507024, %v458
    %v474 = vor.u32 %v472, %v473
    %vm475 = vcmp.lt.s32.totalorder %v456, 1
    %vm476 = vcmp.lt.s32.totalorder %v456, 2
    %vm477 = vcmp.lt.s32.totalorder %v456, 3
    %vm478 = vcmp.lt.s32.totalorder %v456, 4
    %v479 = vsel %vm475, %v459, %v462
    %v480 = vsel %vm478, %v468, 2102212464
    %v481 = vsel %vm477, %v465, %v480
    %v482 = vsel %vm476, %v479, %v481
    %v483 = vsel %vm475, %v462, %v465
    %v484 = vsel %vm478, %v471, 920167782
    %v485 = vsel %vm477, %v468, %v484
    %v486 = vsel %vm476, %v483, %v485
    %v487 = vsel %vm475, %v465, %v468
    %v488 = vsel %vm478, %v474, 1326507024
    %v489 = vsel %vm477, %v471, %v488
    %v490 = vsel %vm476, %v487, %v489
    %v491 = vshll.u32 %v451, 8
    %v492 = vand.u32 %v491, 65535
    %v493 = vshrl.u32 %v491, 16
    %v494 = vand.u32 %v490, 65535
    %v495 = vshrl.u32 %v490, 16
    %v496 = vmul.u32 %v492, %v494
    %v497 = vmul.u32 %v492, %v495
    %v498 = vmul.u32 %v493, %v494
    %v499 = vmul.u32 %v493, %v495
    %v500 = vshll.u32 %v497, 16
    %v501 = vshrl.u32 %v497, 16
    %v502 = vshll.u32 %v498, 16
    %v503 = vshrl.u32 %v498, 16
    %vm504 = vc.u32 %v496, %v500
    %v505 = vsel %vm504, 1, 0
    %v506 = vadd.s32 %v496, %v500
    %v507 = vadd.s32 %v499, %v505
    %vm508 = vc.u32 %v506, %v502
    %v509 = vsel %vm508, 1, 0
    %v510 = vadd.s32 %v506, %v502
    %v511 = vadd.s32 %v507, %v509
    %v512 = vadd.s32 %v511, %v501
    %v513 = vadd.s32 %v512, %v503
    %v514 = vand.u32 %v491, 65535
    %v515 = vshrl.u32 %v491, 16
    %v516 = vand.u32 %v486, 65535
    %v517 = vshrl.u32 %v486, 16
    %v518 = vmul.u32 %v514, %v516
    %v519 = vmul.u32 %v514, %v517
    %v520 = vmul.u32 %v515, %v516
    %v521 = vmul.u32 %v515, %v517
    %v522 = vshll.u32 %v519, 16
    %v523 = vshrl.u32 %v519, 16
    %v524 = vshll.u32 %v520, 16
    %v525 = vshrl.u32 %v520, 16
    %vm526 = vc.u32 %v518, %v522
    %v527 = vsel %vm526, 1, 0
    %v528 = vadd.s32 %v518, %v522
    %v529 = vadd.s32 %v521, %v527
    %vm530 = vc.u32 %v528, %v524
    %v531 = vsel %vm530, 1, 0
    %v532 = vadd.s32 %v528, %v524
    %v533 = vadd.s32 %v529, %v531
    %v534 = vadd.s32 %v533, %v523
    %v535 = vadd.s32 %v534, %v525
    %v536 = vmul.u32 %v491, %v482
    %v537 = vadd.s32 %v513, %v532
    %vm538 = vc.u32 %v513, %v532
    %v539 = vadd.s32 %v535, 1
    %v540 = vsel %vm538, %v539, %v535
    %v541 = vadd.s32 %v536, %v540
    %v542 = vadd.s32 %v541, 536870912
    %v543 = vshrl.u32 %v542, 30
    %v544 = vshll.u32 %v543, 30
    %v545 = vsub.s32 %v541, %v544
    %vm546 = vcmp.lt.s32.totalorder %v545, 0
    %v547 = vsub.s32 0, %v545
    %v548 = vsel %vm546, %v547, %v545
    %v549 = vclz %v548
    %v550 = vsub.s32 %v549, 2
    %vm551 = vcmp.gt.s32.totalorder 0, %v550
    %v552 = vsel %vm551, 0, %v550
    %v553 = vsub.s32 32, %v552
    %v554 = vshll.u32 %v545, %v552
    %v555 = vshrl.u32 %v537, %v553
    %v556 = vor.u32 %v554, %v555
    %v557 = vsub.s32 4294967266, %v552
    %v558 = vadd.s32 %v557, 127
    %v559 = vshll.u32 %v558, 23
    %v560 = vor.u32 4788187, %v559
    %v561 = vand.u32 2147483647, %v560
    %v563 = vcvt.s32.f32 %v556
    %v564 = vmul.f32 %v563, %v561
    %v565 = vxor.u32 %v564, 2147483648
    %v566 = vsel %vm445, %v565, %v564
    %v567 = vsub.s32 4, %v543
    %v568 = vsel %vm445, %v567, %v543
    %v569 = vsel %vm444, %v129, %v566
    %v570 = vsel %vm444, 0, %v568
    %v571 = vmul.f32 %v569, %v569
    %v572 = vmul.f32 %v571, -0.001358992
    %v573 = vadd.f32 %v572, 0.041655596
    %v574 = vmul.f32 %v571, %v573
    %v575 = vadd.f32 %v574, -0.4999988
    %v576 = vmul.f32 %v571, %v575
    %v577 = vadd.f32 1.0, %v576
    %v578 = vmul.f32 %v569, %v569
    %v579 = vmul.f32 %v578, -0.00019511016
    %v580 = vadd.f32 %v579, 0.008332121
    %v581 = vmul.f32 %v578, %v580
    %v582 = vadd.f32 %v581, -0.16666654
    %v583 = vmul.f32 %v578, %v582
    %v584 = vadd.f32 %v583, 1.0
    %v585 = vmul.f32 %v584, %v569
    %vm586 = vweird.f32 %v129
    %v587 = vand.u32 %v570, 3
    %vm588 = vcmp.lt.s32.totalorder %v587, 2
    %vm589 = vcmp.eq.s32.totalorder %v587, 0
    %v590 = vxor.u32 %v585, 2147483648
    %v591 = vsel %vm589, %v577, %v590
    %vm592 = vcmp.eq.s32.totalorder %v587, 2
    %v593 = vxor.u32 %v577, 2147483648
    %v594 = vsel %vm592, %v593, %v585
    %v595 = vsel %vm588, %v591, %v594
    %v596 = vsel %vm586, nan, %v595
    %v597 = vand.u32 2147483647, %v130
    %vm598 = vcmp.le.f32.partialorder %v597, 0.7853982
    %vm599 = vcmp.lt.s32.totalorder %v130, 0
    %v600 = vand.u32 %v130, 2139095040
    %v601 = vshrl.u32 %v600, 23
    %v602 = vsub.s32 %v601, 127
    %v603 = vand.u32 2147483647, %v130
    %v604 = vand.u32 %v603, 8388607
    %v605 = vor.u32 %v604, 8388608
    %v606 = vsub.s32 0, %v605
    %v607 = vadd.s32 %v602, 1
    %vm608 = vcmp.gt.s32.totalorder %v607, 0
    %v609 = vsel %vm608, %v607, 0
    %v610 = vshrl.u32 %v609, 5
    %v611 = vand.u32 %v609, 31
    %v612 = vsub.s32 32, %v611
    %v613 = vshrl.u32 683565275, %v612
    %v614 = vshll.u32 683565275, %v611
    %v615 = vshrl.u32 2475754826, %v612
    %v616 = vor.u32 %v614, %v615
    %v617 = vshll.u32 2475754826, %v611
    %v618 = vshrl.u32 2131351028, %v612
    %v619 = vor.u32 %v617, %v618
    %v620 = vshll.u32 2131351028, %v611
    %v621 = vshrl.u32 2102212464, %v612
    %v622 = vor.u32 %v620, %v621
    %v623 = vshll.u32 2102212464, %v611
    %v624 = vshrl.u32 920167782, %v612
    %v625 = vor.u32 %v623, %v624
    %v626 = vshll.u32 920167782, %v611
    %v627 = vshrl.u32 1326507024, %v612
    %v628 = vor.u32 %v626, %v627
    %vm629 = vcmp.lt.s32.totalorder %v610, 1
    %vm630 = vcmp.lt.s32.totalorder %v610, 2
    %vm631 = vcmp.lt.s32.totalorder %v610, 3
    %vm632 = vcmp.lt.s32.totalorder %v610, 4
    %v633 = vsel %vm629, %v613, %v616
    %v634 = vsel %vm632, %v622, 2102212464
    %v635 = vsel %vm631, %v619, %v634
    %v636 = vsel %vm630, %v633, %v635
    %v637 = vsel %vm629, %v616, %v619
    %v638 = vsel %vm632, %v625, 920167782
    %v639 = vsel %vm631, %v622, %v638
    %v640 = vsel %vm630, %v637, %v639
    %v641 = vsel %vm629, %v619, %v622
    %v642 = vsel %vm632, %v628, 1326507024
    %v643 = vsel %vm631, %v625, %v642
    %v644 = vsel %vm630, %v641, %v643
    %v645 = vshll.u32 %v605, 8
    %v646 = vand.u32 %v645, 65535
    %v647 = vshrl.u32 %v645, 16
    %v648 = vand.u32 %v644, 65535
    %v649 = vshrl.u32 %v644, 16
    %v650 = vmul.u32 %v646, %v648
    %v651 = vmul.u32 %v646, %v649
    %v652 = vmul.u32 %v647, %v648
    %v653 = vmul.u32 %v647, %v649
    %v654 = vshll.u32 %v651, 16
    %v655 = vshrl.u32 %v651, 16
    %v656 = vshll.u32 %v652, 16
    %v657 = vshrl.u32 %v652, 16
    %vm658 = vc.u32 %v650, %v654
    %v659 = vsel %vm658, 1, 0
    %v660 = vadd.s32 %v650, %v654
    %v661 = vadd.s32 %v653, %v659
    %vm662 = vc.u32 %v660, %v656
    %v663 = vsel %vm662, 1, 0
    %v664 = vadd.s32 %v660, %v656
    %v665 = vadd.s32 %v661, %v663
    %v666 = vadd.s32 %v665, %v655
    %v667 = vadd.s32 %v666, %v657
    %v668 = vand.u32 %v645, 65535
    %v669 = vshrl.u32 %v645, 16
    %v670 = vand.u32 %v640, 65535
    %v671 = vshrl.u32 %v640, 16
    %v672 = vmul.u32 %v668, %v670
    %v673 = vmul.u32 %v668, %v671
    %v674 = vmul.u32 %v669, %v670
    %v675 = vmul.u32 %v669, %v671
    %v676 = vshll.u32 %v673, 16
    %v677 = vshrl.u32 %v673, 16
    %v678 = vshll.u32 %v674, 16
    %v679 = vshrl.u32 %v674, 16
    %vm680 = vc.u32 %v672, %v676
    %v681 = vsel %vm680, 1, 0
    %v682 = vadd.s32 %v672, %v676
    %v683 = vadd.s32 %v675, %v681
    %vm684 = vc.u32 %v682, %v678
    %v685 = vsel %vm684, 1, 0
    %v686 = vadd.s32 %v682, %v678
    %v687 = vadd.s32 %v683, %v685
    %v688 = vadd.s32 %v687, %v677
    %v689 = vadd.s32 %v688, %v679
    %v690 = vmul.u32 %v645, %v636
    %v691 = vadd.s32 %v667, %v686
    %vm692 = vc.u32 %v667, %v686
    %v693 = vadd.s32 %v689, 1
    %v694 = vsel %vm692, %v693, %v689
    %v695 = vadd.s32 %v690, %v694
    %v696 = vadd.s32 %v695, 536870912
    %v697 = vshrl.u32 %v696, 30
    %v698 = vshll.u32 %v697, 30
    %v699 = vsub.s32 %v695, %v698
    %vm700 = vcmp.lt.s32.totalorder %v699, 0
    %v701 = vsub.s32 0, %v699
    %v702 = vsel %vm700, %v701, %v699
    %v703 = vclz %v702
    %v704 = vsub.s32 %v703, 2
    %vm705 = vcmp.gt.s32.totalorder 0, %v704
    %v706 = vsel %vm705, 0, %v704
    %v707 = vsub.s32 32, %v706
    %v708 = vshll.u32 %v699, %v706
    %v709 = vshrl.u32 %v691, %v707
    %v710 = vor.u32 %v708, %v709
    %v711 = vsub.s32 4294967266, %v706
    %v712 = vadd.s32 %v711, 127
    %v713 = vshll.u32 %v712, 23
    %v714 = vor.u32 4788187, %v713
    %v715 = vand.u32 2147483647, %v714
    %v717 = vcvt.s32.f32 %v710
    %v718 = vmul.f32 %v717, %v715
    %v719 = vxor.u32 %v718, 2147483648
    %v720 = vsel %vm599, %v719, %v718
    %v721 = vsub.s32 4, %v697
    %v722 = vsel %vm599, %v721, %v697
    %v723 = vsel %vm598, %v130, %v720
    %v724 = vsel %vm598, 0, %v722
    %v725 = vmul.f32 %v723, %v723
    %v726 = vmul.f32 %v725, -0.001358992
    %v727 = vadd.f32 %v726, 0.041655596
    %v728 = vmul.f32 %v725, %v727
    %v729 = vadd.f32 %v728, -0.4999988
    %v730 = vmul.f32 %v725, %v729
    %v731 = vadd.f32 1.0, %v730
    %v732 = vmul.f32 %v723, %v723
    %v733 = vmul.f32 %v732, -0.00019511016
    %v734 = vadd.f32 %v733, 0.008332121
    %v735 = vmul.f32 %v732, %v734
    %v736 = vadd.f32 %v735, -0.16666654
    %v737 = vmul.f32 %v732, %v736
    %v738 = vadd.f32 %v737, 1.0
    %v739 = vmul.f32 %v738, %v723
    %vm740 = vweird.f32 %v130
    %v741 = vand.u32 %v724, 3
    %vm742 = vcmp.lt.s32.totalorder %v741, 2
    %vm743 = vcmp.eq.s32.totalorder %v741, 0
    %v744 = vxor.u32 %v739, 2147483648
    %v745 = vsel %vm743, %v731, %v744
    %vm746 = vcmp.eq.s32.totalorder %v741, 2
    %v747 = vxor.u32 %v731, 2147483648
    %v748 = vsel %vm746, %v747, %v739
    %v749 = vsel %vm742, %v745, %v748
    %v750 = vsel %vm740, nan, %v749
    %v751 = vand.u32 2147483647, %v131
    %vm752 = vcmp.le.f32.partialorder %v751, 0.7853982
    %vm753 = vcmp.lt.s32.totalorder %v131, 0
    %v754 = vand.u32 %v131, 2139095040
    %v755 = vshrl.u32 %v754, 23
    %v756 = vsub.s32 %v755, 127
    %v757 = vand.u32 2147483647, %v131
    %v758 = vand.u32 %v757, 8388607
    %v759 = vor.u32 %v758, 8388608
    %v760 = vsub.s32 0, %v759
    %v761 = vadd.s32 %v756, 1
    %vm762 = vcmp.gt.s32.totalorder %v761, 0
    %v763 = vsel %vm762, %v761, 0
    %v764 = vshrl.u32 %v763, 5
    %v765 = vand.u32 %v763, 31
    %v766 = vsub.s32 32, %v765
    %v767 = vshrl.u32 683565275, %v766
    %v768 = vshll.u32 683565275, %v765
    %v769 = vshrl.u32 2475754826, %v766
    %v770 = vor.u32 %v768, %v769
    %v771 = vshll.u32 2475754826, %v765
    %v772 = vshrl.u32 2131351028, %v766
    %v773 = vor.u32 %v771, %v772
    %v774 = vshll.u32 2131351028, %v765
    %v775 = vshrl.u32 2102212464, %v766
    %v776 = vor.u32 %v774, %v775
    %v777 = vshll.u32 2102212464, %v765
    %v778 = vshrl.u32 920167782, %v766
    %v779 = vor.u32 %v777, %v778
    %v780 = vshll.u32 920167782, %v765
    %v781 = vshrl.u32 1326507024, %v766
    %v782 = vor.u32 %v780, %v781
    %vm783 = vcmp.lt.s32.totalorder %v764, 1
    %vm784 = vcmp.lt.s32.totalorder %v764, 2
    %vm785 = vcmp.lt.s32.totalorder %v764, 3
    %vm786 = vcmp.lt.s32.totalorder %v764, 4
    %v787 = vsel %vm783, %v767, %v770
    %v788 = vsel %vm786, %v776, 2102212464
    %v789 = vsel %vm785, %v773, %v788
    %v790 = vsel %vm784, %v787, %v789
    %v791 = vsel %vm783, %v770, %v773
    %v792 = vsel %vm786, %v779, 920167782
    %v793 = vsel %vm785, %v776, %v792
    %v794 = vsel %vm784, %v791, %v793
    %v795 = vsel %vm783, %v773, %v776
    %v796 = vsel %vm786, %v782, 1326507024
    %v797 = vsel %vm785, %v779, %v796
    %v798 = vsel %vm784, %v795, %v797
    %v799 = vshll.u32 %v759, 8
    %v800 = vand.u32 %v799, 65535
    %v801 = vshrl.u32 %v799, 16
    %v802 = vand.u32 %v798, 65535
    %v803 = vshrl.u32 %v798, 16
    %v804 = vmul.u32 %v800, %v802
    %v805 = vmul.u32 %v800, %v803
    %v806 = vmul.u32 %v801, %v802
    %v807 = vmul.u32 %v801, %v803
    %v808 = vshll.u32 %v805, 16
    %v809 = vshrl.u32 %v805, 16
    %v810 = vshll.u32 %v806, 16
    %v811 = vshrl.u32 %v806, 16
    %vm812 = vc.u32 %v804, %v808
    %v813 = vsel %vm812, 1, 0
    %v814 = vadd.s32 %v804, %v808
    %v815 = vadd.s32 %v807, %v813
    %vm816 = vc.u32 %v814, %v810
    %v817 = vsel %vm816, 1, 0
    %v818 = vadd.s32 %v814, %v810
    %v819 = vadd.s32 %v815, %v817
    %v820 = vadd.s32 %v819, %v809
    %v821 = vadd.s32 %v820, %v811
    %v822 = vand.u32 %v799, 65535
    %v823 = vshrl.u32 %v799, 16
    %v824 = vand.u32 %v794, 65535
    %v825 = vshrl.u32 %v794, 16
    %v826 = vmul.u32 %v822, %v824
    %v827 = vmul.u32 %v822, %v825
    %v828 = vmul.u32 %v823, %v824
    %v829 = vmul.u32 %v823, %v825
    %v830 = vshll.u32 %v827, 16
    %v831 = vshrl.u32 %v827, 16
    %v832 = vshll.u32 %v828, 16
    %v833 = vshrl.u32 %v828, 16
    %vm834 = vc.u32 %v826, %v830
    %v835 = vsel %vm834, 1, 0
    %v836 = vadd.s32 %v826, %v830
    %v837 = vadd.s32 %v829, %v835
    %vm838 = vc.u32 %v836, %v832
    %v839 = vsel %vm838, 1, 0
    %v840 = vadd.s32 %v836, %v832
    %v841 = vadd.s32 %v837, %v839
    %v842 = vadd.s32 %v841, %v831
    %v843 = vadd.s32 %v842, %v833
    %v844 = vmul.u32 %v799, %v790
    %v845 = vadd.s32 %v821, %v840
    %vm846 = vc.u32 %v821, %v840
    %v847 = vadd.s32 %v843, 1
    %v848 = vsel %vm846, %v847, %v843
    %v849 = vadd.s32 %v844, %v848
    %v850 = vadd.s32 %v849, 536870912
    %v851 = vshrl.u32 %v850, 30
    %v852 = vshll.u32 %v851, 30
    %v853 = vsub.s32 %v849, %v852
    %vm854 = vcmp.lt.s32.totalorder %v853, 0
    %v855 = vsub.s32 0, %v853
    %v856 = vsel %vm854, %v855, %v853
    %v857 = vclz %v856
    %v858 = vsub.s32 %v857, 2
    %vm859 = vcmp.gt.s32.totalorder 0, %v858
    %v860 = vsel %vm859, 0, %v858
    %v861 = vsub.s32 32, %v860
    %v862 = vshll.u32 %v853, %v860
    %v863 = vshrl.u32 %v845, %v861
    %v864 = vor.u32 %v862, %v863
    %v865 = vsub.s32 4294967266, %v860
    %v866 = vadd.s32 %v865, 127
    %v867 = vshll.u32 %v866, 23
    %v868 = vor.u32 4788187, %v867
    %v869 = vand.u32 2147483647, %v868
    %v871 = vcvt.s32.f32 %v864
    %v872 = vmul.f32 %v871, %v869
    %v873 = vxor.u32 %v872, 2147483648
    %v874 = vsel %vm753, %v873, %v872
    %v875 = vsub.s32 4, %v851
    %v876 = vsel %vm753, %v875, %v851
    %v877 = vsel %vm752, %v131, %v874
    %v878 = vsel %vm752, 0, %v876
    %v879 = vmul.f32 %v877, %v877
    %v880 = vmul.f32 %v879, -0.001358992
    %v881 = vadd.f32 %v880, 0.041655596
    %v882 = vmul.f32 %v879, %v881
    %v883 = vadd.f32 %v882, -0.4999988
    %v884 = vmul.f32 %v879, %v883
    %v885 = vadd.f32 1.0, %v884
    %v886 = vmul.f32 %v877, %v877
    %v887 = vmul.f32 %v886, -0.00019511016
    %v888 = vadd.f32 %v887, 0.008332121
    %v889 = vmul.f32 %v886, %v888
    %v890 = vadd.f32 %v889, -0.16666654
    %v891 = vmul.f32 %v886, %v890
    %v892 = vadd.f32 %v891, 1.0
    %v893 = vmul.f32 %v892, %v877
    %vm894 = vweird.f32 %v131
    %v895 = vand.u32 %v878, 3
    %vm896 = vcmp.lt.s32.totalorder %v895, 2
    %vm897 = vcmp.eq.s32.totalorder %v895, 0
    %v898 = vxor.u32 %v893, 2147483648
    %v899 = vsel %vm897, %v885, %v898
    %vm900 = vcmp.eq.s32.totalorder %v895, 2
    %v901 = vxor.u32 %v885, 2147483648
    %v902 = vsel %vm900, %v901, %v893
    %v903 = vsel %vm896, %v899, %v902
    %v904 = vsel %vm894, nan, %v903
    %v905 = vand.u32 2147483647, %v132
    %vm906 = vcmp.le.f32.partialorder %v905, 0.7853982
    %vm907 = vcmp.lt.s32.totalorder %v132, 0
    %v908 = vand.u32 %v132, 2139095040
    %v909 = vshrl.u32 %v908, 23
    %v910 = vsub.s32 %v909, 127
    %v911 = vand.u32 2147483647, %v132
    %v912 = vand.u32 %v911, 8388607
    %v913 = vor.u32 %v912, 8388608
    %v914 = vsub.s32 0, %v913
    %v915 = vadd.s32 %v910, 1
    %vm916 = vcmp.gt.s32.totalorder %v915, 0
    %v917 = vsel %vm916, %v915, 0
    %v918 = vshrl.u32 %v917, 5
    %v919 = vand.u32 %v917, 31
    %v920 = vsub.s32 32, %v919
    %v921 = vshrl.u32 683565275, %v920
    %v922 = vshll.u32 683565275, %v919
    %v923 = vshrl.u32 2475754826, %v920
    %v924 = vor.u32 %v922, %v923
    %v925 = vshll.u32 2475754826, %v919
    %v926 = vshrl.u32 2131351028, %v920
    %v927 = vor.u32 %v925, %v926
    %v928 = vshll.u32 2131351028, %v919
    %v929 = vshrl.u32 2102212464, %v920
    %v930 = vor.u32 %v928, %v929
    %v931 = vshll.u32 2102212464, %v919
    %v932 = vshrl.u32 920167782, %v920
    %v933 = vor.u32 %v931, %v932
    %v934 = vshll.u32 920167782, %v919
    %v935 = vshrl.u32 1326507024, %v920
    %v936 = vor.u32 %v934, %v935
    %vm937 = vcmp.lt.s32.totalorder %v918, 1
    %vm938 = vcmp.lt.s32.totalorder %v918, 2
    %vm939 = vcmp.lt.s32.totalorder %v918, 3
    %vm940 = vcmp.lt.s32.totalorder %v918, 4
    %v941 = vsel %vm937, %v921, %v924
    %v942 = vsel %vm940, %v930, 2102212464
    %v943 = vsel %vm939, %v927, %v942
    %v944 = vsel %vm938, %v941, %v943
    %v945 = vsel %vm937, %v924, %v927
    %v946 = vsel %vm940, %v933, 920167782
    %v947 = vsel %vm939, %v930, %v946
    %v948 = vsel %vm938, %v945, %v947
    %v949 = vsel %vm937, %v927, %v930
    %v950 = vsel %vm940, %v936, 1326507024
    %v951 = vsel %vm939, %v933, %v950
    %v952 = vsel %vm938, %v949, %v951
    %v953 = vshll.u32 %v913, 8
    %v954 = vand.u32 %v953, 65535
    %v955 = vshrl.u32 %v953, 16
    %v956 = vand.u32 %v952, 65535
    %v957 = vshrl.u32 %v952, 16
    %v958 = vmul.u32 %v954, %v956
    %v959 = vmul.u32 %v954, %v957
    %v960 = vmul.u32 %v955, %v956
    %v961 = vmul.u32 %v955, %v957
    %v962 = vshll.u32 %v959, 16
    %v963 = vshrl.u32 %v959, 16
    %v964 = vshll.u32 %v960, 16
    %v965 = vshrl.u32 %v960, 16
    %vm966 = vc.u32 %v958, %v962
    %v967 = vsel %vm966, 1, 0
    %v968 = vadd.s32 %v958, %v962
    %v969 = vadd.s32 %v961, %v967
    %vm970 = vc.u32 %v968, %v964
    %v971 = vsel %vm970, 1, 0
    %v972 = vadd.s32 %v968, %v964
    %v973 = vadd.s32 %v969, %v971
    %v974 = vadd.s32 %v973, %v963
    %v975 = vadd.s32 %v974, %v965
    %v976 = vand.u32 %v953, 65535
    %v977 = vshrl.u32 %v953, 16
    %v978 = vand.u32 %v948, 65535
    %v979 = vshrl.u32 %v948, 16
    %v980 = vmul.u32 %v976, %v978
    %v981 = vmul.u32 %v976, %v979
    %v982 = vmul.u32 %v977, %v978
    %v983 = vmul.u32 %v977, %v979
    %v984 = vshll.u32 %v981, 16
    %v985 = vshrl.u32 %v981, 16
    %v986 = vshll.u32 %v982, 16
    %v987 = vshrl.u32 %v982, 16
    %vm988 = vc.u32 %v980, %v984
    %v989 = vsel %vm988, 1, 0
    %v990 = vadd.s32 %v980, %v984
    %v991 = vadd.s32 %v983, %v989
    %vm992 = vc.u32 %v990, %v986
    %v993 = vsel %vm992, 1, 0
    %v994 = vadd.s32 %v990, %v986
    %v995 = vadd.s32 %v991, %v993
    %v996 = vadd.s32 %v995, %v985
    %v997 = vadd.s32 %v996, %v987
    %v998 = vmul.u32 %v953, %v944
    %v999 = vadd.s32 %v975, %v994
    %vm1000 = vc.u32 %v975, %v994
    %v1001 = vadd.s32 %v997, 1
    %v1002 = vsel %vm1000, %v1001, %v997
    %v1003 = vadd.s32 %v998, %v1002
    %v1004 = vadd.s32 %v1003, 536870912
    %v1005 = vshrl.u32 %v1004, 30
    %v1006 = vshll.u32 %v1005, 30
    %v1007 = vsub.s32 %v1003, %v1006
    %vm1008 = vcmp.lt.s32.totalorder %v1007, 0
    %v1009 = vsub.s32 0, %v1007
    %v1010 = vsel %vm1008, %v1009, %v1007
    %v1011 = vclz %v1010
    %v1012 = vsub.s32 %v1011, 2
    %vm1013 = vcmp.gt.s32.totalorder 0, %v1012
    %v1014 = vsel %vm1013, 0, %v1012
    %v1015 = vsub.s32 32, %v1014
    %v1016 = vshll.u32 %v1007, %v1014
    %v1017 = vshrl.u32 %v999, %v1015
    %v1018 = vor.u32 %v1016, %v1017
    %v1019 = vsub.s32 4294967266, %v1014
    %v1020 = vadd.s32 %v1019, 127
    %v1021 = vshll.u32 %v1020, 23
    %v1022 = vor.u32 4788187, %v1021
    %v1023 = vand.u32 2147483647, %v1022
    %v1025 = vcvt.s32.f32 %v1018
    %v1026 = vmul.f32 %v1025, %v1023
    %v1027 = vxor.u32 %v1026, 2147483648
    %v1028 = vsel %vm907, %v1027, %v1026
    %v1029 = vsub.s32 4, %v1005
    %v1030 = vsel %vm907, %v1029, %v1005
    %v1031 = vsel %vm906, %v132, %v1028
    %v1032 = vsel %vm906, 0, %v1030
    %v1033 = vmul.f32 %v1031, %v1031
    %v1034 = vmul.f32 %v1033, -0.001358992
    %v1035 = vadd.f32 %v1034, 0.041655596
    %v1036 = vmul.f32 %v1033, %v1035
    %v1037 = vadd.f32 %v1036, -0.4999988
    %v1038 = vmul.f32 %v1033, %v1037
    %v1039 = vadd.f32 1.0, %v1038
    %v1040 = vmul.f32 %v1031, %v1031
    %v1041 = vmul.f32 %v1040, -0.00019511016
    %v1042 = vadd.f32 %v1041, 0.008332121
    %v1043 = vmul.f32 %v1040, %v1042
    %v1044 = vadd.f32 %v1043, -0.16666654
    %v1045 = vmul.f32 %v1040, %v1044
    %v1046 = vadd.f32 %v1045, 1.0
    %v1047 = vmul.f32 %v1046, %v1031
    %vm1048 = vweird.f32 %v132
    %v1049 = vand.u32 %v1032, 3
    %vm1050 = vcmp.lt.s32.totalorder %v1049, 2
    %vm1051 = vcmp.eq.s32.totalorder %v1049, 0
    %v1052 = vxor.u32 %v1047, 2147483648
    %v1053 = vsel %vm1051, %v1039, %v1052
    %vm1054 = vcmp.eq.s32.totalorder %v1049, 2
    %v1055 = vxor.u32 %v1039, 2147483648
    %v1056 = vsel %vm1054, %v1055, %v1047
    %v1057 = vsel %vm1050, %v1053, %v1056
    %v1058 = vsel %vm1048, nan, %v1057
    %v1059 = vand.u32 2147483647, %v133
    %vm1060 = vcmp.le.f32.partialorder %v1059, 0.7853982
    %vm1061 = vcmp.lt.s32.totalorder %v133, 0
    %v1062 = vand.u32 %v133, 2139095040
    %v1063 = vshrl.u32 %v1062, 23
    %v1064 = vsub.s32 %v1063, 127
    %v1065 = vand.u32 2147483647, %v133
    %v1066 = vand.u32 %v1065, 8388607
    %v1067 = vor.u32 %v1066, 8388608
    %v1068 = vsub.s32 0, %v1067
    %v1069 = vadd.s32 %v1064, 1
    %vm1070 = vcmp.gt.s32.totalorder %v1069, 0
    %v1071 = vsel %vm1070, %v1069, 0
    %v1072 = vshrl.u32 %v1071, 5
    %v1073 = vand.u32 %v1071, 31
    %v1074 = vsub.s32 32, %v1073
    %v1075 = vshrl.u32 683565275, %v1074
    %v1076 = vshll.u32 683565275, %v1073
    %v1077 = vshrl.u32 2475754826, %v1074
    %v1078 = vor.u32 %v1076, %v1077
    %v1079 = vshll.u32 2475754826, %v1073
    %v1080 = vshrl.u32 2131351028, %v1074
    %v1081 = vor.u32 %v1079, %v1080
    %v1082 = vshll.u32 2131351028, %v1073
    %v1083 = vshrl.u32 2102212464, %v1074
    %v1084 = vor.u32 %v1082, %v1083
    %v1085 = vshll.u32 2102212464, %v1073
    %v1086 = vshrl.u32 920167782, %v1074
    %v1087 = vor.u32 %v1085, %v1086
    %v1088 = vshll.u32 920167782, %v1073
    %v1089 = vshrl.u32 1326507024, %v1074
    %v1090 = vor.u32 %v1088, %v1089
    %vm1091 = vcmp.lt.s32.totalorder %v1072, 1
    %vm1092 = vcmp.lt.s32.totalorder %v1072, 2
    %vm1093 = vcmp.lt.s32.totalorder %v1072, 3
    %vm1094 = vcmp.lt.s32.totalorder %v1072, 4
    %v1095 = vsel %vm1091, %v1075, %v1078
    %v1096 = vsel %vm1094, %v1084, 2102212464
    %v1097 = vsel %vm1093, %v1081, %v1096
    %v1098 = vsel %vm1092, %v1095, %v1097
    %v1099 = vsel %vm1091, %v1078, %v1081
    %v1100 = vsel %vm1094, %v1087, 920167782
    %v1101 = vsel %vm1093, %v1084, %v1100
    %v1102 = vsel %vm1092, %v1099, %v1101
    %v1103 = vsel %vm1091, %v1081, %v1084
    %v1104 = vsel %vm1094, %v1090, 1326507024
    %v1105 = vsel %vm1093, %v1087, %v1104
    %v1106 = vsel %vm1092, %v1103, %v1105
    %v1107 = vshll.u32 %v1067, 8
    %v1108 = vand.u32 %v1107, 65535
    %v1109 = vshrl.u32 %v1107, 16
    %v1110 = vand.u32 %v1106, 65535
    %v1111 = vshrl.u32 %v1106, 16
    %v1112 = vmul.u32 %v1108, %v1110
    %v1113 = vmul.u32 %v1108, %v1111
    %v1114 = vmul.u32 %v1109, %v1110
    %v1115 = vmul.u32 %v1109, %v1111
    %v1116 = vshll.u32 %v1113, 16
    %v1117 = vshrl.u32 %v1113, 16
    %v1118 = vshll.u32 %v1114, 16
    %v1119 = vshrl.u32 %v1114, 16
    %vm1120 = vc.u32 %v1112, %v1116
    %v1121 = vsel %vm1120, 1, 0
    %v1122 = vadd.s32 %v1112, %v1116
    %v1123 = vadd.s32 %v1115, %v1121
    %vm1124 = vc.u32 %v1122, %v1118
    %v1125 = vsel %vm1124, 1, 0
    %v1126 = vadd.s32 %v1122, %v1118
    %v1127 = vadd.s32 %v1123, %v1125
    %v1128 = vadd.s32 %v1127, %v1117
    %v1129 = vadd.s32 %v1128, %v1119
    %v1130 = vand.u32 %v1107, 65535
    %v1131 = vshrl.u32 %v1107, 16
    %v1132 = vand.u32 %v1102, 65535
    %v1133 = vshrl.u32 %v1102, 16
    %v1134 = vmul.u32 %v1130, %v1132
    %v1135 = vmul.u32 %v1130, %v1133
    %v1136 = vmul.u32 %v1131, %v1132
    %v1137 = vmul.u32 %v1131, %v1133
    %v1138 = vshll.u32 %v1135, 16
    %v1139 = vshrl.u32 %v1135, 16
    %v1140 = vshll.u32 %v1136, 16
    %v1141 = vshrl.u32 %v1136, 16
    %vm1142 = vc.u32 %v1134, %v1138
    %v1143 = vsel %vm1142, 1, 0
    %v1144 = vadd.s32 %v1134, %v1138
    %v1145 = vadd.s32 %v1137, %v1143
    %vm1146 = vc.u32 %v1144, %v1140
    %v1147 = vsel %vm1146, 1, 0
    %v1148 = vadd.s32 %v1144, %v1140
    %v1149 = vadd.s32 %v1145, %v1147
    %v1150 = vadd.s32 %v1149, %v1139
    %v1151 = vadd.s32 %v1150, %v1141
    %v1152 = vmul.u32 %v1107, %v1098
    %v1153 = vadd.s32 %v1129, %v1148
    %vm1154 = vc.u32 %v1129, %v1148
    %v1155 = vadd.s32 %v1151, 1
    %v1156 = vsel %vm1154, %v1155, %v1151
    %v1157 = vadd.s32 %v1152, %v1156
    %v1158 = vadd.s32 %v1157, 536870912
    %v1159 = vshrl.u32 %v1158, 30
    %v1160 = vshll.u32 %v1159, 30
    %v1161 = vsub.s32 %v1157, %v1160
    %vm1162 = vcmp.lt.s32.totalorder %v1161, 0
    %v1163 = vsub.s32 0, %v1161
    %v1164 = vsel %vm1162, %v1163, %v1161
    %v1165 = vclz %v1164
    %v1166 = vsub.s32 %v1165, 2
    %vm1167 = vcmp.gt.s32.totalorder 0, %v1166
    %v1168 = vsel %vm1167, 0, %v1166
    %v1169 = vsub.s32 32, %v1168
    %v1170 = vshll.u32 %v1161, %v1168
    %v1171 = vshrl.u32 %v1153, %v1169
    %v1172 = vor.u32 %v1170, %v1171
    %v1173 = vsub.s32 4294967266, %v1168
    %v1174 = vadd.s32 %v1173, 127
    %v1175 = vshll.u32 %v1174, 23
    %v1176 = vor.u32 4788187, %v1175
    %v1177 = vand.u32 2147483647, %v1176
    %v1179 = vcvt.s32.f32 %v1172
    %v1180 = vmul.f32 %v1179, %v1177
    %v1181 = vxor.u32 %v1180, 2147483648
    %v1182 = vsel %vm1061, %v1181, %v1180
    %v1183 = vsub.s32 4, %v1159
    %v1184 = vsel %vm1061, %v1183, %v1159
    %v1185 = vsel %vm1060, %v133, %v1182
    %v1186 = vsel %vm1060, 0, %v1184
    %v1187 = vmul.f32 %v1185, %v1185
    %v1188 = vmul.f32 %v1187, -0.001358992
    %v1189 = vadd.f32 %v1188, 0.041655596
    %v1190 = vmul.f32 %v1187, %v1189
    %v1191 = vadd.f32 %v1190, -0.4999988
    %v1192 = vmul.f32 %v1187, %v1191
    %v1193 = vadd.f32 1.0, %v1192
    %v1194 = vmul.f32 %v1185, %v1185
    %v1195 = vmul.f32 %v1194, -0.00019511016
    %v1196 = vadd.f32 %v1195, 0.008332121
    %v1197 = vmul.f32 %v1194, %v1196
    %v1198 = vadd.f32 %v1197, -0.16666654
    %v1199 = vmul.f32 %v1194, %v1198
    %v1200 = vadd.f32 %v1199, 1.0
    %v1201 = vmul.f32 %v1200, %v1185
    %vm1202 = vweird.f32 %v133
    %v1203 = vand.u32 %v1186, 3
    %vm1204 = vcmp.lt.s32.totalorder %v1203, 2
    %vm1205 = vcmp.eq.s32.totalorder %v1203, 0
    %v1206 = vxor.u32 %v1201, 2147483648
    %v1207 = vsel %vm1205, %v1193, %v1206
    %vm1208 = vcmp.eq.s32.totalorder %v1203, 2
    %v1209 = vxor.u32 %v1193, 2147483648
    %v1210 = vsel %vm1208, %v1209, %v1201
    %v1211 = vsel %vm1204, %v1207, %v1210
    %v1212 = vsel %vm1202, nan, %v1211
    %v1213 = vand.u32 2147483647, %v134
    %vm1214 = vcmp.le.f32.partialorder %v1213, 0.7853982
    %vm1215 = vcmp.lt.s32.totalorder %v134, 0
    %v1216 = vand.u32 %v134, 2139095040
    %v1217 = vshrl.u32 %v1216, 23
    %v1218 = vsub.s32 %v1217, 127
    %v1219 = vand.u32 2147483647, %v134
    %v1220 = vand.u32 %v1219, 8388607
    %v1221 = vor.u32 %v1220, 8388608
    %v1222 = vsub.s32 0, %v1221
    %v1223 = vadd.s32 %v1218, 1
    %vm1224 = vcmp.gt.s32.totalorder %v1223, 0
    %v1225 = vsel %vm1224, %v1223, 0
    %v1226 = vshrl.u32 %v1225, 5
    %v1227 = vand.u32 %v1225, 31
    %v1228 = vsub.s32 32, %v1227
    %v1229 = vshrl.u32 683565275, %v1228
    %v1230 = vshll.u32 683565275, %v1227
    %v1231 = vshrl.u32 2475754826, %v1228
    %v1232 = vor.u32 %v1230, %v1231
    %v1233 = vshll.u32 2475754826, %v1227
    %v1234 = vshrl.u32 2131351028, %v1228
    %v1235 = vor.u32 %v1233, %v1234
    %v1236 = vshll.u32 2131351028, %v1227
    %v1237 = vshrl.u32 2102212464, %v1228
    %v1238 = vor.u32 %v1236, %v1237
    %v1239 = vshll.u32 2102212464, %v1227
    %v1240 = vshrl.u32 920167782, %v1228
    %v1241 = vor.u32 %v1239, %v1240
    %v1242 = vshll.u32 920167782, %v1227
    %v1243 = vshrl.u32 1326507024, %v1228
    %v1244 = vor.u32 %v1242, %v1243
    %vm1245 = vcmp.lt.s32.totalorder %v1226, 1
    %vm1246 = vcmp.lt.s32.totalorder %v1226, 2
    %vm1247 = vcmp.lt.s32.totalorder %v1226, 3
    %vm1248 = vcmp.lt.s32.totalorder %v1226, 4
    %v1249 = vsel %vm1245, %v1229, %v1232
    %v1250 = vsel %vm1248, %v1238, 2102212464
    %v1251 = vsel %vm1247, %v1235, %v1250
    %v1252 = vsel %vm1246, %v1249, %v1251
    %v1253 = vsel %vm1245, %v1232, %v1235
    %v1254 = vsel %vm1248, %v1241, 920167782
    %v1255 = vsel %vm1247, %v1238, %v1254
    %v1256 = vsel %vm1246, %v1253, %v1255
    %v1257 = vsel %vm1245, %v1235, %v1238
    %v1258 = vsel %vm1248, %v1244, 1326507024
    %v1259 = vsel %vm1247, %v1241, %v1258
    %v1260 = vsel %vm1246, %v1257, %v1259
    %v1261 = vshll.u32 %v1221, 8
    %v1262 = vand.u32 %v1261, 65535
    %v1263 = vshrl.u32 %v1261, 16
    %v1264 = vand.u32 %v1260, 65535
    %v1265 = vshrl.u32 %v1260, 16
    %v1266 = vmul.u32 %v1262, %v1264
    %v1267 = vmul.u32 %v1262, %v1265
    %v1268 = vmul.u32 %v1263, %v1264
    %v1269 = vmul.u32 %v1263, %v1265
    %v1270 = vshll.u32 %v1267, 16
    %v1271 = vshrl.u32 %v1267, 16
    %v1272 = vshll.u32 %v1268, 16
    %v1273 = vshrl.u32 %v1268, 16
    %vm1274 = vc.u32 %v1266, %v1270
    %v1275 = vsel %vm1274, 1, 0
    %v1276 = vadd.s32 %v1266, %v1270
    %v1277 = vadd.s32 %v1269, %v1275
    %vm1278 = vc.u32 %v1276, %v1272
    %v1279 = vsel %vm1278, 1, 0
    %v1280 = vadd.s32 %v1276, %v1272
    %v1281 = vadd.s32 %v1277, %v1279
    %v1282 = vadd.s32 %v1281, %v1271
    %v1283 = vadd.s32 %v1282, %v1273
    %v1284 = vand.u32 %v1261, 65535
    %v1285 = vshrl.u32 %v1261, 16
    %v1286 = vand.u32 %v1256, 65535
    %v1287 = vshrl.u32 %v1256, 16
    %v1288 = vmul.u32 %v1284, %v1286
    %v1289 = vmul.u32 %v1284, %v1287
    %v1290 = vmul.u32 %v1285, %v1286
    %v1291 = vmul.u32 %v1285, %v1287
    %v1292 = vshll.u32 %v1289, 16
    %v1293 = vshrl.u32 %v1289, 16
    %v1294 = vshll.u32 %v1290, 16
    %v1295 = vshrl.u32 %v1290, 16
    %vm1296 = vc.u32 %v1288, %v1292
    %v1297 = vsel %vm1296, 1, 0
    %v1298 = vadd.s32 %v1288, %v1292
    %v1299 = vadd.s32 %v1291, %v1297
    %vm1300 = vc.u32 %v1298, %v1294
    %v1301 = vsel %vm1300, 1, 0
    %v1302 = vadd.s32 %v1298, %v1294
    %v1303 = vadd.s32 %v1299, %v1301
    %v1304 = vadd.s32 %v1303, %v1293
    %v1305 = vadd.s32 %v1304, %v1295
    %v1306 = vmul.u32 %v1261, %v1252
    %v1307 = vadd.s32 %v1283, %v1302
    %vm1308 = vc.u32 %v1283, %v1302
    %v1309 = vadd.s32 %v1305, 1
    %v1310 = vsel %vm1308, %v1309, %v1305
    %v1311 = vadd.s32 %v1306, %v1310
    %v1312 = vadd.s32 %v1311, 536870912
    %v1313 = vshrl.u32 %v1312, 30
    %v1314 = vshll.u32 %v1313, 30
    %v1315 = vsub.s32 %v1311, %v1314
    %vm1316 = vcmp.lt.s32.totalorder %v1315, 0
    %v1317 = vsub.s32 0, %v1315
    %v1318 = vsel %vm1316, %v1317, %v1315
    %v1319 = vclz %v1318
    %v1320 = vsub.s32 %v1319, 2
    %vm1321 = vcmp.gt.s32.totalorder 0, %v1320
    %v1322 = vsel %vm1321, 0, %v1320
    %v1323 = vsub.s32 32, %v1322
    %v1324 = vshll.u32 %v1315, %v1322
    %v1325 = vshrl.u32 %v1307, %v1323
    %v1326 = vor.u32 %v1324, %v1325
    %v1327 = vsub.s32 4294967266, %v1322
    %v1328 = vadd.s32 %v1327, 127
    %v1329 = vshll.u32 %v1328, 23
    %v1330 = vor.u32 4788187, %v1329
    %v1331 = vand.u32 2147483647, %v1330
    %v1333 = vcvt.s32.f32 %v1326
    %v1334 = vmul.f32 %v1333, %v1331
    %v1335 = vxor.u32 %v1334, 2147483648
    %v1336 = vsel %vm1215, %v1335, %v1334
    %v1337 = vsub.s32 4, %v1313
    %v1338 = vsel %vm1215, %v1337, %v1313
    %v1339 = vsel %vm1214, %v134, %v1336
    %v1340 = vsel %vm1214, 0, %v1338
    %v1341 = vmul.f32 %v1339, %v1339
    %v1342 = vmul.f32 %v1341, -0.001358992
    %v1343 = vadd.f32 %v1342, 0.041655596
    %v1344 = vmul.f32 %v1341, %v1343
    %v1345 = vadd.f32 %v1344, -0.4999988
    %v1346 = vmul.f32 %v1341, %v1345
    %v1347 = vadd.f32 1.0, %v1346
    %v1348 = vmul.f32 %v1339, %v1339
    %v1349 = vmul.f32 %v1348, -0.00019511016
    %v1350 = vadd.f32 %v1349, 0.008332121
    %v1351 = vmul.f32 %v1348, %v1350
    %v1352 = vadd.f32 %v1351, -0.16666654
    %v1353 = vmul.f32 %v1348, %v1352
    %v1354 = vadd.f32 %v1353, 1.0
    %v1355 = vmul.f32 %v1354, %v1339
    %vm1356 = vweird.f32 %v134
    %v1357 = vand.u32 %v1340, 3
    %vm1358 = vcmp.lt.s32.totalorder %v1357, 2
    %vm1359 = vcmp.eq.s32.totalorder %v1357, 0
    %v1360 = vxor.u32 %v1355, 2147483648
    %v1361 = vsel %vm1359, %v1347, %v1360
    %vm1362 = vcmp.eq.s32.totalorder %v1357, 2
    %v1363 = vxor.u32 %v1347, 2147483648
    %v1364 = vsel %vm1362, %v1363, %v1355
    %v1365 = vsel %vm1358, %v1361, %v1364
    %v1366 = vsel %vm1356, nan, %v1365
    %1367 = vst [vmem:[#allocation2] sm:$0xff] %v288
    %1368 = vst [vmem:[#allocation2 + $0x8] sm:$0xff] %v442
    %1369 = vst [vmem:[#allocation2 + $0x10] sm:$0xff] %v596
    %1370 = vst [vmem:[#allocation2 + $0x18] sm:$0xff] %v750
    %1371 = vst [vmem:[#allocation2 + $0x20] sm:$0xff] %v904
    %1372 = vst [vmem:[#allocation2 + $0x28] sm:$0xff] %v1058
    %1373 = vst [vmem:[#allocation2 + $0x30] sm:$0xff] %v1212
    %1374 = vst [vmem:[#allocation2 + $0x38] sm:$0xff] %v1366
    // Predicated region
    $region14: #{tpu_custom_call.1} parent=1 // pred_check
      _
    $region15: #{tpu_custom_call.1} parent=1 // pred_check_branch
      %1376 = sbr.rel (0) target = $region17
    $region16: #{tpu_custom_call.1} parent=1 // pred_region
      %1378 = vsyncadd [#allocation3], 0
      %s1379 = sshll.u32 [#allocation2], 4
      %s1380 = int_to_ptr.vmem [resolvable:$true] %s1379
      %s1381 = sshll.u32 %s3, 4
      %s1382 = int_to_ptr.hbm [resolvable:$true] %s1381
      %1387 = dma.vmem_to_hbm [thread:$0]  %s1380, 1024, %s1382, [#allocation3], 128, 128, 8
    $region17: #{tpu_custom_call.1} parent=1 // pred_fallthru
      _
    // Predicated region
    $region18: #{tpu_custom_call.1} parent=1 // pred_check
      _
    $region19: #{tpu_custom_call.1} parent=1 // pred_check_branch
      %1389 = sbr.rel (0) target = $region21
    $region20: #{tpu_custom_call.1} parent=1 // pred_region
      %1391 = dma.done [#allocation3], 1024
    $region21: #{tpu_custom_call.1} parent=1 // pred_fallthru
      _
    %1392 = vsyncpa [#allocation3], 1

</llo_original>
